<compile_context>
chip_gen: v5e
topology: v5e:2x2
jax: 0.10.0
libtpu: 0.0.40
codegen_flags: <defaults>
</compile_context>

<pallas_src>
import functools

import jax
import jax.numpy as jnp
from jax.experimental import pallas as pl
from jax.experimental.pallas import tpu as pltpu


LANE = 128


def _round_up(x, m):
    return ((x + m - 1) // m) * m


def _pad2(a, rows, cols):
    r, c = a.shape
    if r == rows and c == cols:
        return a
    return jnp.pad(a, ((0, rows - r), (0, cols - c)))


def _vmem_budget_bytes():
    """Generation-aware VMEM budget: ~3/4 of physical VMEM per TensorCore
    (~96 MiB on v5e/v6e, ~48 MiB on v7x); conservative 48 MiB fallback."""
    try:
        cap = int(pltpu.get_tpu_info().vmem_capacity_bytes)
    except Exception:
        cap = 64 * 1024 * 1024
    return (cap * 3) // 4


# ----------------------------- Pallas kernels -----------------------------

def _fullk_kernel(*refs, apply_relu, res_mode):
    """out = relu?( x @ w + bias (+ residual | + rx @ rw + rbias) ).

    Single full-K MXU pass per (i, j) output tile: no K grid axis, no VMEM
    accumulator scratch; the epilogue writes o_ref directly.
    """
    if res_mode == "matmul":
        x_ref, w_ref, bias_ref, rx_ref, rw_ref, rbias_ref, o_ref = refs
    elif res_mode == "add":
        x_ref, w_ref, bias_ref, res_ref, o_ref = refs
    else:
        x_ref, w_ref, bias_ref, o_ref = refs

    out = jnp.dot(x_ref[...], w_ref[...], preferred_element_type=jnp.float32)
    out = out + bias_ref[...]
    if res_mode == "add":
        out = out + res_ref[...]
    elif res_mode == "matmul":
        out = out + jnp.dot(rx_ref[...], rw_ref[...],
                            preferred_element_type=jnp.float32) + rbias_ref[...]
    if apply_relu:
        out = jnp.maximum(out, 0.0)
    o_ref[...] = out.astype(o_ref.dtype)


def _ktiled_kernel(*refs, apply_relu, res_mode):
    """Large-K fallback: acc += x @ w per K step; epilogue on the last step."""
    if res_mode == "matmul":
        (x_ref, w_ref, bias_ref, rx_ref, rw_ref, rbias_ref,
         o_ref, acc_ref) = refs
    elif res_mode == "add":
        x_ref, w_ref, bias_ref, res_ref, o_ref, acc_ref = refs
    else:
        x_ref, w_ref, bias_ref, o_ref, acc_ref = refs

    k = pl.program_id(2)

    @pl.when(k == 0)
    def _init():
        acc_ref[...] = jnp.zeros_like(acc_ref)

    acc_ref[...] += jnp.dot(x_ref[...], w_ref[...],
                            preferred_element_type=jnp.float32)

    @pl.when(k == pl.num_programs(2) - 1)
    def _epilogue():
        out = acc_ref[...] + bias_ref[...]
        if res_mode == "add":
            out = out + res_ref[...]
        elif res_mode == "matmul":
            out = out + jnp.dot(rx_ref[...], rw_ref[...],
                                preferred_element_type=jnp.float32) + rbias_ref[...]
        if apply_relu:
            out = jnp.maximum(out, 0.0)
        o_ref[...] = out.astype(o_ref.dtype)


# ----------------------------- fused matmul wrapper -----------------------------

def fused_matmul_bn(x2d, w2d, bias, *, relu=True, residual=None,
                    res_x=None, res_w=None, res_bias=None,
                    out_dtype=jnp.bfloat16):
    """Fused conv-as-matmul + bias + optional residual + optional ReLU.

    BN scale is already folded into the weight columns by the caller.
      x2d:(M,K)  w2d:(K,Nout)  bias:(Nout,)
      residual:(M,Nout) f32                        -> identity shortcut add
      res_x:(M,Kr) res_w:(Kr,Nout) res_bias:(Nout,)-> fused 1x1-proj shortcut
    """
    M, K = x2d.shape
    K2, Nout = w2d.shape
    assert K == K2
    has_add = residual is not None
    has_proj = res_x is not None
    assert not (has_add and has_proj)
    res_mode = "add" if has_add else ("matmul" if has_proj else "none")
    out_bytes = jnp.dtype(out_dtype).itemsize
    budget = _vmem_budget_bytes()

    # Lane-dense output-channel padding; pad to 256 when wide enough so tn=256
    # (matching the 256-wide MXU on v6e/v7x) is always available.
    Np = _round_up(Nout, 256) if Nout > LANE else _round_up(Nout, LANE)
    Mp = _round_up(M, LANE)

    def _pick(dim):
        for t in (512, 256):
            if dim % t == 0:
                return t
        return LANE

    tm = _pick(Mp)
    tn = _pick(Np)
    Kr = res_x.shape[1] if has_proj else 0

    def vmem_estimate(tm_, tn_, k_bytes_cols):
        est = 2 * tm_ * k_bytes_cols * 2          # x (bf16, double-buffered)
        est += 2 * k_bytes_cols * tn_ * 2         # w (bf16, 2 buffers)
        est += 2 * tm_ * tn_ * out_bytes          # output
        est += 2 * tn_ * 4                        # bias
        if has_add:
            est += 2 * tm_ * tn_ * 4              # f32 residual
        if has_proj:
            est += 2 * (tm_ * Kr * 2 + Kr * tn_ * 2 + tn_ * 4)
        return est

    # Prefer the full-K, weight-resident path whenever the working set fits.
    use_fullk = K <= 8192
    if use_fullk:
        while vmem_estimate(tm, tn, K) > budget and tm > LANE:
            tm //= 2
        while vmem_estimate(tm, tn, K) > budget and tn > LANE:
            tn //= 2
        use_fullk = vmem_estimate(tm, tn, K) <= budget

    if use_fullk:
        num_i, num_j = Mp // tm, Np // tn

        xb = _pad2(x2d.astype(jnp.bfloat16), Mp, K)
        wb = _pad2(w2d.astype(jnp.bfloat16), K, Np)
        bb = _pad2(bias.reshape(1, Nout).astype(jnp.float32), 1, Np)

        # Grid ordered (j, i): the (K, tn) weight strip and bias are constant
        # along the inner i sweep, so Pallas keeps them VMEM-resident and only
        # re-DMAs them once per column strip.
        in_specs = [
            pl.BlockSpec((tm, K), lambda j, i: (i, 0)),
            pl.BlockSpec((K, tn), lambda j, i: (0, j)),
            pl.BlockSpec((1, tn), lambda j, i: (0, j)),
        ]
        args = [xb, wb, bb]
        flops = 2 * Mp * K * Np
        bytes_accessed = xb.size * 2 * num_j + wb.size * 2 + bb.size * 4

        if has_add:
            rb = _pad2(residual.astype(jnp.float32), Mp, Np)
            in_specs.append(pl.BlockSpec((tm, tn), lambda j, i: (i, j)))
            args.append(rb)
            bytes_accessed += rb.size * 4
        elif has_proj:
            rxb = _pad2(res_x.astype(jnp.bfloat16), Mp, Kr)
            rwb = _pad2(res_w.astype(jnp.bfloat16), Kr, Np)
            rbb = _pad2(res_bias.reshape(1, Nout).astype(jnp.float32), 1, Np)
            in_specs += [
                pl.BlockSpec((tm, Kr), lambda j, i: (i, 0)),
                pl.BlockSpec((Kr, tn), lambda j, i: (0, j)),
                pl.BlockSpec((1, tn), lambda j, i: (0, j)),
            ]
            args += [rxb, rwb, rbb]
            flops += 2 * Mp * Kr * Np
            bytes_accessed += rxb.size * 2 * num_j + rwb.size * 2 + rbb.size * 4

        bytes_accessed += Mp * Np * out_bytes
        kernel = functools.partial(_fullk_kernel, apply_relu=relu,
                                   res_mode=res_mode)
        out = pl.pallas_call(
            kernel,
            out_shape=jax.ShapeDtypeStruct((Mp, Np), out_dtype),
            grid=(num_j, num_i),
            in_specs=in_specs,
            out_specs=pl.BlockSpec((tm, tn), lambda j, i: (i, j)),
            compiler_params=pltpu.CompilerParams(
                dimension_semantics=("parallel", "parallel"),
                vmem_limit_bytes=budget),
            cost_estimate=pl.CostEstimate(
                flops=flops, transcendentals=0, bytes_accessed=bytes_accessed),
        )(*args)
        return out[:M, :Nout]

    # --- Large-K fallback: stream K with a VMEM f32 accumulator. ---
    tk = 512
    Kp = _round_up(K, tk)
    while (vmem_estimate(tm, tn, 3 * tk) + tm * tn * 4) > budget and tm > LANE:
        tm //= 2
    num_i, num_j, num_k = Mp // tm, Np // tn, Kp // tk

    xb = _pad2(x2d.astype(jnp.bfloat16), Mp, Kp)
    wb = _pad2(w2d.astype(jnp.bfloat16), Kp, Np)
    bb = _pad2(bias.reshape(1, Nout).astype(jnp.float32), 1, Np)
    in_specs = [
        pl.BlockSpec((tm, tk), lambda i, j, k: (i, k),
                     pipeline_mode=pl.Buffered(3)),
        pl.BlockSpec((tk, tn), lambda i, j, k: (k, j),
                     pipeline_mode=pl.Buffered(3)),
        pl.BlockSpec((1, tn), lambda i, j, k: (0, j)),
    ]
    args = [xb, wb, bb]
    flops = 2 * Mp * Kp * Np
    bytes_accessed = xb.size * 2 + wb.size * 2 * num_i + bb.size * 4

    if has_add:
        rb = _pad2(residual.astype(jnp.float32), Mp, Np)
        in_specs.append(pl.BlockSpec((tm, tn), lambda i, j, k: (i, j)))
        args.append(rb)
        bytes_accessed += rb.size * 4
    elif has_proj:
        rxb = _pad2(res_x.astype(jnp.bfloat16), Mp, Kr)
        rwb = _pad2(res_w.astype(jnp.bfloat16), Kr, Np)
        rbb = _pad2(res_bias.reshape(1, Nout).astype(jnp.float32), 1, Np)
        in_specs += [
            pl.BlockSpec((tm, Kr), lambda i, j, k: (i, 0)),
            pl.BlockSpec((Kr, tn), lambda i, j, k: (0, j)),
            pl.BlockSpec((1, tn), lambda i, j, k: (0, j)),
        ]
        args += [rxb, rwb, rbb]
        flops += 2 * Mp * Kr * Np
        bytes_accessed += rxb.size * 2 + rwb.size * 2 + rbb.size * 4

    bytes_accessed += Mp * Np * out_bytes
    kernel = functools.partial(_ktiled_kernel, apply_relu=relu,
                               res_mode=res_mode)
    out = pl.pallas_call(
        kernel,
        out_shape=jax.ShapeDtypeStruct((Mp, Np), out_dtype),
        grid=(num_i, num_j, num_k),
        in_specs=in_specs,
        out_specs=pl.BlockSpec((tm, tn), lambda i, j, k: (i, j)),
        scratch_shapes=[pltpu.VMEM((tm, tn), jnp.float32)],
        compiler_params=pltpu.CompilerParams(
            dimension_semantics=("parallel", "parallel", "arbitrary"),
            vmem_limit_bytes=budget),
        cost_estimate=pl.CostEstimate(
            flops=flops, transcendentals=0, bytes_accessed=bytes_accessed),
    )(*args)
    return out[:M, :Nout]


# ----------------------------- JAX glue -----------------------------

def im2col(x_nhwc, kh, kw, stride, pad):
    """x: (N, H, W, C) -> (N*Hout*Wout, kh*kw*C), plus Hout, Wout."""
    N, H, W, C = x_nhwc.shape
    xp = jnp.pad(x_nhwc, ((0, 0), (pad, pad), (pad, pad), (0, 0)))
    Hout = (H + 2 * pad - kh) // stride + 1
    Wout = (W + 2 * pad - kw) // stride + 1
    cols = []
    for i in range(kh):
        for j in range(kw):
            cols.append(xp[:, i:i + stride * Hout:stride,
                           j:j + stride * Wout:stride, :])
    p = jnp.stack(cols, axis=3)  # (N, Hout, Wout, kh*kw, C)
    return p.reshape(N * Hout * Wout, kh * kw * C), Hout, Wout


def _fold_bn(gamma, beta, mean, var, eps=1e-5):
    scale = gamma / jnp.sqrt(var + eps)
    return scale, beta - mean * scale


def basic_block_forward(x_nchw, params, stride):
    """Pallas implementation of BasicBlock.forward. Input/output NCHW f32."""
    x = jnp.transpose(x_nchw, (0, 2, 3, 1)).astype(jnp.float32)  # NHWC f32
    N, H, W, Cin = x.shape
    planes = params["conv1_w"].shape[0]
    xb = x.astype(jnp.bfloat16)  # bf16 activations feed im2col + MXU

    # ---- conv1 (3x3, stride) + bn1 + relu; BN scale folded into weights ----
    w1 = jnp.transpose(params["conv1_w"], (2, 3, 1, 0)).reshape(9 * Cin, planes)
    s1, b1 = _fold_bn(params["bn1_gamma"], params["bn1_beta"],
                      params["bn1_mean"], params["bn1_var"])
    x1, H1, W1 = im2col(xb, 3, 3, stride, 1)
    out1 = fused_matmul_bn(x1, w1 * s1[None, :], b1, relu=True,
                           out_dtype=jnp.bfloat16)
    out1_img = out1.reshape(N, H1, W1, planes)

    # ---- conv2 (3x3, s=1) + bn2 + shortcut + relu : one fused kernel ----
    w2 = jnp.transpose(params["conv2_w"], (2, 3, 1, 0)).reshape(9 * planes, planes)
    s2, b2 = _fold_bn(params["bn2_gamma"], params["bn2_beta"],
                      params["bn2_mean"], params["bn2_var"])
    x2, _, _ = im2col(out1_img, 3, 3, 1, 1)

    if stride != 1 or Cin != planes:
        # 1x1 projection shortcut fused into the conv2 kernel.
        wsc = jnp.transpose(params["sc_w"], (2, 3, 1, 0)).reshape(Cin, planes)
        ssc, bsc = _fold_bn(params["sc_bn_gamma"], params["sc_bn_beta"],
                            params["sc_bn_mean"], params["sc_bn_var"])
        xs = xb[:, ::stride, ::stride, :].reshape(N * H1 * W1, Cin)
        out = fused_matmul_bn(x2, w2 * s2[None, :], b2, relu=True,
                              res_x=xs, res_w=wsc * ssc[None, :], res_bias=bsc,
                              out_dtype=jnp.bfloat16)
    else:
        # Identity shortcut kept in f32 (exact residual vs. the reference).
        shortcut = x.reshape(N * H * W, Cin)
        out = fused_matmul_bn(x2, w2 * s2[None, :], b2, relu=True,
                              residual=shortcut, out_dtype=jnp.bfloat16)

    out_img = out.reshape(N, H1, W1, planes)
    return jnp.transpose(out_img, (0, 3, 1, 2)).astype(jnp.float32)  # NCHW f32


# ----------------------------- reference (pure JAX, f32) -----------------------------

def reference_forward(x_nchw, params, stride):
    def conv(x, w, s, pad):
        return jax.lax.conv_general_dilated(
            x, w, (s, s), [(pad, pad), (pad, pad)],
            dimension_numbers=("NCHW", "OIHW", "NCHW"),
            precision=jax.lax.Precision.HIGHEST)

    def bn(x, g, b, m, v, eps=1e-5):
        g = g[None, :, None, None]; b = b[None, :, None, None]
        m = m[None, :, None, None]; v = v[None, :, None, None]
        return (x - m) / jnp.sqrt(v + eps) * g + b

    Cin = x_nchw.shape[1]
    planes = params["conv1_w"].shape[0]
    out = jax.nn.relu(bn(conv(x_nchw, params["conv1_w"], stride, 1),
                         params["bn1_gamma"], params["bn1_beta"],
                         params["bn1_mean"], params["bn1_var"]))
    out = bn(conv(out, params["conv2_w"], 1, 1),
             params["bn2_gamma"], params["bn2_beta"],
             params["bn2_mean"], params["bn2_var"])
    if stride != 1 or Cin != planes:
        sc = bn(conv(x_nchw, params["sc_w"], stride, 0),
                params["sc_bn_gamma"], params["sc_bn_beta"],
                params["sc_bn_mean"], params["sc_bn_var"])
    else:
        sc = x_nchw
    return jax.nn.relu(out + sc)


# ----------------------------- main -----------------------------

def make_params(key, in_planes, planes, with_shortcut):
    ks = jax.random.split(key, 10)
    p = {
        "conv1_w": jax.random.normal(ks[0], (planes, in_planes, 3, 3), jnp.float32)
                   * (2.0 / (9 * in_planes)) ** 0.5,
        "bn1_gamma": 1.0 + 0.1 * jnp.arange(planes, dtype=jnp.float32),
        "bn1_beta": 0.05 * jnp.arange(planes, dtype=jnp.float32),
        "bn1_mean": 0.1 * jax.random.normal(ks[1], (planes,), jnp.float32),
        "bn1_var": 1.0 + 0.1 * jax.random.uniform(ks[2], (planes,), jnp.float32),
        "conv2_w": jax.random.normal(ks[3], (planes, planes, 3, 3), jnp.float32)
                   * (2.0 / (9 * planes)) ** 0.5,
        "bn2_gamma": 1.0 - 0.05 * jnp.arange(planes, dtype=jnp.float32),
        "bn2_beta": -0.02 * jnp.arange(planes, dtype=jnp.float32),
        "bn2_mean": 0.1 * jax.random.normal(ks[4], (planes,), jnp.float32),
        "bn2_var": 1.0 + 0.1 * jax.random.uniform(ks[5], (planes,), jnp.float32),
    }
    if with_shortcut:
        p.update({
            "sc_w": jax.random.normal(ks[6], (planes, in_planes, 1, 1), jnp.float32)
                    * (2.0 / in_planes) ** 0.5,
            "sc_bn_gamma": 1.0 + 0.03 * jnp.arange(planes, dtype=jnp.float32),
            "sc_bn_beta": 0.01 * jnp.arange(planes, dtype=jnp.float32),
            "sc_bn_mean": 0.1 * jax.random.normal(ks[7], (planes,), jnp.float32),
            "sc_bn_var": 1.0 + 0.1 * jax.random.uniform(ks[8], (planes,), jnp.float32),
        })
    return p


if __name__ == "__main__":
    key = jax.random.PRNGKey(0)
    k1, k2, k3, k4 = jax.random.split(key, 4)

    # Case 1: projection shortcut (stride=2, channel expansion 4 -> 8).
    in_planes, planes, stride = 4, 8, 2
    N, H, W = 2, 16, 16
    params = make_params(k1, in_planes, planes, with_shortcut=True)
    x = jax.random.normal(k2, (N, in_planes, H, W), jnp.float32)
    out = jax.block_until_ready(basic_block_forward(x, params, stride))
    ref = jax.block_until_ready(reference_forward(x, params, stride))
    assert out.shape == ref.shape == (N, planes, H // stride, W // stride), out.shape
    err = float(jnp.max(jnp.abs(out - ref)))
    # bf16 MXU operands / bf16 writeback vs f32 HIGHEST reference.
    assert jnp.allclose(out, ref, atol=1e-1, rtol=1e-1), err

    # Case 2: identity shortcut (stride=1, same channels).
    in_planes2 = planes2 = 8
    params2 = make_params(k3, in_planes2, planes2, with_shortcut=False)
    x2 = jax.random.normal(k4, (N, in_planes2, H, W), jnp.float32)
    out2 = jax.block_until_ready(basic_block_forward(x2, params2, 1))
    ref2 = jax.block_until_ready(reference_forward(x2, params2, 1))
    assert out2.shape == ref2.shape == (N, planes2, H, W), out2.shape
    err2 = float(jnp.max(jnp.abs(out2 - ref2)))
    assert jnp.allclose(out2, ref2, atol=1e-1, rtol=1e-1), err2

    print("KERNEL_OK")
</pallas_src>

<mosaic_0001>
module attributes {stable_mosaic.version = 11 : i64} {
  func.func @_fullk_kernel(%arg0: i32, %arg1: i32, %arg2: memref<128x36xbf16, #tpu.memory_space<vmem>>, %arg3: memref<36x128xbf16, #tpu.memory_space<vmem>>, %arg4: memref<1x128xf32, #tpu.memory_space<vmem>>, %arg5: memref<128x128xbf16, #tpu.memory_space<vmem>>) attributes {dimension_semantics = [#tpu.dimension_semantics<parallel>, #tpu.dimension_semantics<parallel>], iteration_bounds = array<i64: 1, 1>, scalar_prefetch = 0 : i64, scratch_operands = 0 : i64, tpu.core_type = #tpu.core_type<tc>, window_params = [{transform_indices = @transform_0, window_bounds = array<i64: 128, 36>}, {transform_indices = @transform_1, window_bounds = array<i64: 36, 128>}, {transform_indices = @transform_2, window_bounds = array<i64: 1, 128>}, {transform_indices = @transform_3, window_bounds = array<i64: 128, 128>}]} {
    %c0 = arith.constant 0 : index
    %c0_0 = arith.constant 0 : index
    %0 = vector.load %arg2[%c0, %c0_0] : memref<128x36xbf16, #tpu.memory_space<vmem>>, vector<128x36xbf16>
    %c0_1 = arith.constant 0 : index
    %c0_2 = arith.constant 0 : index
    %1 = vector.load %arg3[%c0_1, %c0_2] : memref<36x128xbf16, #tpu.memory_space<vmem>>, vector<36x128xbf16>
    %cst = arith.constant dense<0.000000e+00> : vector<128x128xf32>
    %2 = tpu.matmul %0, %1, %cst {dimension_numbers = #tpu.dot_dimension_numbers<[1], [0], [0], [1], [0, 0, 1, 1], [], []>} : vector<128x36xbf16>, vector<36x128xbf16>, vector<128x128xf32> -> vector<128x128xf32>
    %c0_3 = arith.constant 0 : index
    %c0_4 = arith.constant 0 : index
    %3 = vector.load %arg4[%c0_3, %c0_4] : memref<1x128xf32, #tpu.memory_space<vmem>>, vector<1x128xf32>
    %4 = vector.broadcast %3 : vector<1x128xf32> to vector<128x128xf32>
    %5 = arith.addf %2, %4 : vector<128x128xf32>
    %cst_5 = arith.constant 0.000000e+00 : f32
    %6 = vector.broadcast %cst_5 : f32 to vector<128x128xf32>
    %7 = arith.maximumf %5, %6 : vector<128x128xf32>
    %8 = arith.truncf %7 : vector<128x128xf32> to vector<128x128xbf16>
    %c0_6 = arith.constant 0 : index
    %c0_7 = arith.constant 0 : index
    %9 = vector.load %arg5[%c0_6, %c0_7] : memref<128x128xbf16, #tpu.memory_space<vmem>>, vector<128x128xbf16>
    tpu.vector_store %arg5[%c0_6, %c0_7], %8 {strides = array<i32>} : memref<128x128xbf16, #tpu.memory_space<vmem>>, vector<128x128xbf16>,
    return
  }
  func.func @transform_0(%arg0: i32, %arg1: i32) -> (i32, i32) {
    %c0_i32 = arith.constant 0 : i32
    %c0_i32_0 = arith.constant 0 : i32
    return %arg1, %c0_i32 : i32, i32
  }
  func.func @transform_1(%arg0: i32, %arg1: i32) -> (i32, i32) {
    %c0_i32 = arith.constant 0 : i32
    %c0_i32_0 = arith.constant 0 : i32
    return %c0_i32, %arg0 : i32, i32
  }
  func.func @transform_2(%arg0: i32, %arg1: i32) -> (i32, i32) {
    %c0_i32 = arith.constant 0 : i32
    %c0_i32_0 = arith.constant 0 : i32
    return %c0_i32, %arg0 : i32, i32
  }
  func.func @transform_3(%arg0: i32, %arg1: i32) -> (i32, i32) {
    %c0_i32 = arith.constant 0 : i32
    return %arg1, %arg0 : i32, i32
  }
}

</mosaic_0001>

<llo_original>
// kernel: tpu_custom_call.1
$region0: #{tpu_custom_call.1}
  #allocation0 [shape = 'u32[]', space=smem, size = 0x4, offset = 0x4, fixed_abs, tag = 'smem constant byte address 0x4 - core index']
  #allocation1 [shape = 'u32[72,128]{1,0:T(1,128)}', space=vmem, size = 0x9000, scoped, tag = 'internal scratch']
  %s0 = inlined_call_operand.vmem [shape: bf16[128,36], index: 0, kind: input, shape index: {}]
  %s1 = inlined_call_operand.vmem [shape: bf16[36,128], index: 1, kind: input, shape index: {}]
  %s2 = inlined_call_operand.vmem [shape: f32[1,128], index: 2, kind: input, shape index: {}]
  %s3 = inlined_call_operand.hbm [shape: bf16[128,128], index: 3, kind: output, shape index: {}]
  %s4 = sld [smem:[#allocation0]]
  $region22: #{tpu_custom_call.1} parent=0
    _
  %s6 = ssub.s32 1, %s4
  %s7 = scalar_select 0, %s6, %s4
  $region1: #{tpu_custom_call.1} parent=0
    #allocation2 [shape = 'u8[32768]{0}', space=vmem, size = 0x8000, scoped, tag = 'output window, operand 0, single buffered']
    #allocation3 [shape = 's32[1]{0}', space=sflag, size = 0x4, scoped, tag = 'scoped memory for tpu_custom_call.1']
    %8 = vsyncpa [#allocation3], 0
    // Predicated region
    $region2: #{tpu_custom_call.1} parent=1 // pred_check
      _
    $region3: #{tpu_custom_call.1} parent=1 // pred_check_branch
      %10 = sbr.rel (0) target = $region5
    $region4: #{tpu_custom_call.1} parent=1 // pred_region
      _
    $region5: #{tpu_custom_call.1} parent=1 // pred_fallthru
      _
    // Predicated region
    $region6: #{tpu_custom_call.1} parent=1 // pred_check
      _
    $region7: #{tpu_custom_call.1} parent=1 // pred_check_branch
      %12 = sbr.rel (0) target = $region9
    $region8: #{tpu_custom_call.1} parent=1 // pred_region
      _
    $region9: #{tpu_custom_call.1} parent=1 // pred_fallthru
      _
    // Predicated region
    $region10: #{tpu_custom_call.1} parent=1 // pred_check
      _
    $region11: #{tpu_custom_call.1} parent=1 // pred_check_branch
      %14 = sbr.rel (0) target = $region13
    $region12: #{tpu_custom_call.1} parent=1 // pred_region
      _
    $region13: #{tpu_custom_call.1} parent=1 // pred_fallthru
      _
    %v16 = vld [vmem:[%s0] sm:$0xf]
    %v17 = vld [vmem:[%s0 + $0x4] sm:$0xf]
    %v18 = vld [vmem:[%s0 + $0x8] sm:$0xf]
    %v19 = vld [vmem:[%s0 + $0xc] sm:$0xf]
    %v20 = vld [vmem:[%s0 + $0x10] sm:$0xf]
    %v21 = vld [vmem:[%s0 + $0x14] sm:$0xf]
    %v22 = vld [vmem:[%s0 + $0x18] sm:$0xf]
    %v23 = vld [vmem:[%s0 + $0x1c] sm:$0xf]
    %v24 = vld [vmem:[%s0 + $0x20] sm:$0xf]
    %v25 = vld [vmem:[%s0 + $0x24] sm:$0xf]
    %v26 = vld [vmem:[%s0 + $0x28] sm:$0xf]
    %v27 = vld [vmem:[%s0 + $0x2c] sm:$0xf]
    %v28 = vld [vmem:[%s0 + $0x30] sm:$0xf]
    %v29 = vld [vmem:[%s0 + $0x34] sm:$0xf]
    %v30 = vld [vmem:[%s0 + $0x38] sm:$0xf]
    %v31 = vld [vmem:[%s0 + $0x3c] sm:$0xf]
    %v32 = vld [vmem:[%s1] sm:$0xf]
    %v33 = vld [vmem:[%s1 + $0x4] sm:$0xf]
    %v34 = vld [vmem:[%s1 + $0x8] sm:$0xf]
    %v35 = vld [vmem:[%s1 + $0xc] sm:$0xf]
    %v36 = vld [vmem:[%s1 + $0x10] sm:$0x3]
    %v37 = vld [vmem:[%s2] sm:$0x1]
    %v39 = vperm.slane %v37, 0
    %v57 = vunpack.c.l.b16 %v16
    %v58 = vunpack.c.l.b16 %v17
    %v59 = vunpack.c.l.b16 %v18
    %v60 = vunpack.c.l.b16 %v19
    %v61 = vunpack.c.l.b16 %v20
    %v62 = vunpack.c.l.b16 %v21
    %v63 = vunpack.c.l.b16 %v22
    %v64 = vunpack.c.l.b16 %v23
    %v65 = vunpack.c.l.b16 %v24
    %v66 = vunpack.c.l.b16 %v25
    %v67 = vunpack.c.l.b16 %v26
    %v68 = vunpack.c.l.b16 %v27
    %v69 = vunpack.c.l.b16 %v28
    %v70 = vunpack.c.l.b16 %v29
    %v71 = vunpack.c.l.b16 %v30
    %v72 = vunpack.c.l.b16 %v31
    %v73 = vpack.c.b16 %v58, %v57
    %v74 = vpack.c.b16 %v60, %v59
    %v75 = vpack.c.b16 %v62, %v61
    %v76 = vpack.c.b16 %v64, %v63
    %v77 = vpack.c.b16 %v66, %v65
    %v78 = vpack.c.b16 %v68, %v67
    %v79 = vpack.c.b16 %v70, %v69
    %v80 = vpack.c.b16 %v72, %v71
    %v86 = vunpack.c.l.b16 %v32
    %v87 = vunpack.c.l.b16 %v33
    %v88 = vunpack.c.l.b16 %v34
    %v89 = vunpack.c.l.b16 %v35
    %v90 = vunpack.c.l.b16 %v36
    %v91 = vpack.c.b16 %v87, %v86
    %v92 = vpack.c.b16 %v89, %v88
    %v93 = vpack.c.b16 %v90, %v90
    %vm96 = vcmask 293888
    %v98 = vsel %vm96, %v73, 0
    %v101 = vsel %vm96, %v74, 0
    %v104 = vsel %vm96, %v75, 0
    %v107 = vsel %vm96, %v76, 0
    %v110 = vsel %vm96, %v77, 0
    %v113 = vsel %vm96, %v78, 0
    %v116 = vsel %vm96, %v79, 0
    %v119 = vsel %vm96, %v80, 0
    %vm121 = vcmask 1041408
    %v123 = vsel %vm121, %v93, 0
    %125 = vmatpush.bf16.msra.mxu0 0
    %126 = vmatpush.bf16.msra.mxu0 0
    %127 = vmatpush.bf16.msra.mxu0 0
    %128 = vmatpush.bf16.msra.mxu0 0
    %129 = vmatpush.bf16.msra.mxu0 0
    %130 = vmatpush.bf16.msra.mxu0 %v123
    %131 = vmatpush.bf16.msra.mxu0 %v92
    %132 = vmatpush.bf16.msra.mxu0 %v91
    %133 = vmatmul.bf16.gmra.mxu0 %v98
    %v134 = vpop.f32.mrf.mxu0
    %v135 = vadd.f32 %v39, %v134
    %v136 = vpop.f32.mrf.mxu0
    %v137 = vadd.f32 %v39, %v136
    %138 = vmatmul.bf16.gmra.mxu0 %v101
    %v139 = vpop.f32.mrf.mxu0
    %v140 = vadd.f32 %v39, %v139
    %v141 = vpop.f32.mrf.mxu0
    %v142 = vadd.f32 %v39, %v141
    %143 = vmatmul.bf16.gmra.mxu0 %v104
    %v144 = vpop.f32.mrf.mxu0
    %v145 = vadd.f32 %v39, %v144
    %v146 = vpop.f32.mrf.mxu0
    %v147 = vadd.f32 %v39, %v146
    %148 = vmatmul.bf16.gmra.mxu0 %v107
    %v149 = vpop.f32.mrf.mxu0
    %v150 = vadd.f32 %v39, %v149
    %v151 = vpop.f32.mrf.mxu0
    %v152 = vadd.f32 %v39, %v151
    %153 = vmatmul.bf16.gmra.mxu0 %v110
    %v154 = vpop.f32.mrf.mxu0
    %v155 = vadd.f32 %v39, %v154
    %v156 = vpop.f32.mrf.mxu0
    %v157 = vadd.f32 %v39, %v156
    %158 = vmatmul.bf16.gmra.mxu0 %v113
    %v159 = vpop.f32.mrf.mxu0
    %v160 = vadd.f32 %v39, %v159
    %v161 = vpop.f32.mrf.mxu0
    %v162 = vadd.f32 %v39, %v161
    %163 = vmatmul.bf16.gmra.mxu0 %v116
    %v164 = vpop.f32.mrf.mxu0
    %v165 = vadd.f32 %v39, %v164
    %v166 = vpop.f32.mrf.mxu0
    %v167 = vadd.f32 %v39, %v166
    %168 = vmatmul.bf16.gmra.mxu0 %v119
    %v169 = vpop.f32.mrf.mxu0
    %v170 = vadd.f32 %v39, %v169
    %v171 = vpop.f32.mrf.mxu0
    %v172 = vadd.f32 %v39, %v171
    %173 = vdwg.mxu0
    %v174 = vmax.f32 %v135, 0.0
    %v175 = vmax.f32 %v137, 0.0
    %v176 = vmax.f32 %v140, 0.0
    %v177 = vmax.f32 %v142, 0.0
    %v178 = vmax.f32 %v145, 0.0
    %v179 = vmax.f32 %v147, 0.0
    %v180 = vmax.f32 %v150, 0.0
    %v181 = vmax.f32 %v152, 0.0
    %v182 = vmax.f32 %v155, 0.0
    %v183 = vmax.f32 %v157, 0.0
    %v184 = vmax.f32 %v160, 0.0
    %v185 = vmax.f32 %v162, 0.0
    %v186 = vmax.f32 %v165, 0.0
    %v187 = vmax.f32 %v167, 0.0
    %v188 = vmax.f32 %v170, 0.0
    %v189 = vmax.f32 %v172, 0.0
    %v190 = vpack.c.bf16 %v174, %v174
    %v191 = vpack.c.bf16 %v175, %v175
    %v192 = vpack.c.bf16 %v176, %v176
    %v193 = vpack.c.bf16 %v177, %v177
    %v194 = vpack.c.bf16 %v178, %v178
    %v195 = vpack.c.bf16 %v179, %v179
    %v196 = vpack.c.bf16 %v180, %v180
    %v197 = vpack.c.bf16 %v181, %v181
    %v198 = vpack.c.bf16 %v182, %v182
    %v199 = vpack.c.bf16 %v183, %v183
    %v200 = vpack.c.bf16 %v184, %v184
    %v201 = vpack.c.bf16 %v185, %v185
    %v202 = vpack.c.bf16 %v186, %v186
    %v203 = vpack.c.bf16 %v187, %v187
    %v204 = vpack.c.bf16 %v188, %v188
    %v205 = vpack.c.bf16 %v189, %v189
    %206 = vst [vmem:[#allocation2] sm:$0xf] %v190
    %207 = vst [vmem:[#allocation2 + $0x4] sm:$0xf] %v191
    %208 = vst [vmem:[#allocation2 + $0x8] sm:$0xf] %v192
    %209 = vst [vmem:[#allocation2 + $0xc] sm:$0xf] %v193
    %210 = vst [vmem:[#allocation2 + $0x10] sm:$0xf] %v194
    %211 = vst [vmem:[#allocation2 + $0x14] sm:$0xf] %v195
    %212 = vst [vmem:[#allocation2 + $0x18] sm:$0xf] %v196
    %213 = vst [vmem:[#allocation2 + $0x1c] sm:$0xf] %v197
    %214 = vst [vmem:[#allocation2 + $0x20] sm:$0xf] %v198
    %215 = vst [vmem:[#allocation2 + $0x24] sm:$0xf] %v199
    %216 = vst [vmem:[#allocation2 + $0x28] sm:$0xf] %v200
    %217 = vst [vmem:[#allocation2 + $0x2c] sm:$0xf] %v201
    %218 = vst [vmem:[#allocation2 + $0x30] sm:$0xf] %v202
    %219 = vst [vmem:[#allocation2 + $0x34] sm:$0xf] %v203
    %220 = vst [vmem:[#allocation2 + $0x38] sm:$0xf] %v204
    %221 = vst [vmem:[#allocation2 + $0x3c] sm:$0xf] %v205
    // Predicated region
    $region14: #{tpu_custom_call.1} parent=1 // pred_check
      _
    $region15: #{tpu_custom_call.1} parent=1 // pred_check_branch
      %223 = sbr.rel (0) target = $region17
    $region16: #{tpu_custom_call.1} parent=1 // pred_region
      %225 = vsyncadd [#allocation3], 0
      %s226 = sshll.u32 [#allocation2], 4
      %s227 = int_to_ptr.vmem [resolvable:$true] %s226
      %s228 = sshll.u32 %s3, 4
      %s229 = int_to_ptr.hbm [resolvable:$true] %s228
      %234 = dma.vmem_to_hbm [thread:$0]  %s227, 1024, %s229, [#allocation3], 64, 64, 4
    $region17: #{tpu_custom_call.1} parent=1 // pred_fallthru
      _
    // Predicated region
    $region18: #{tpu_custom_call.1} parent=1 // pred_check
      _
    $region19: #{tpu_custom_call.1} parent=1 // pred_check_branch
      %236 = sbr.rel (0) target = $region21
    $region20: #{tpu_custom_call.1} parent=1 // pred_region
      %238 = dma.done [#allocation3], 1024
    $region21: #{tpu_custom_call.1} parent=1 // pred_fallthru
      _
    %239 = vsyncpa [#allocation3], 1

</llo_original>
